<compile_context>
chip_gen: v7x
topology: tpu7x:2x2x1
jax: 0.10.0
libtpu: 0.0.40
codegen_flags: <defaults>
</compile_context>

<pallas_src>
import jax
import jax.numpy as jnp
from jax.experimental import pallas as pl
from jax.experimental.pallas import tpu as pltpu

_LANES = 128
_SUBLANES = 8


def _affine_kernel(w_ref, b_ref, x_ref, o_ref):
    # nn.Linear(1, 1) on a (..., 1) input is a scalar affine map: y = x * w + b.
    # w_ref / b_ref are scalar-prefetched SMEM refs (read on the scalar unit,
    # no VMEM tile / DMA per grid step).
    w = w_ref[0]
    b = b_ref[0]
    o_ref[...] = (x_ref[...].astype(jnp.float32) * w + b).astype(o_ref.dtype)


def _round_up(n, m):
    return ((n + m - 1) // m) * m


def linear11(x, weight, bias, *, block_rows=2048, min_pallas_elems=64 * 1024,
             alias_input=False):
    """Forward of PyTorch nn.Linear(1, 1) applied to an (..., 1) input.

    weight: (1, 1) array (PyTorch layout), bias: (1,) array.
    alias_input: set True only when the caller can donate x's buffer; the output
      slab then aliases the input slab (halves slab HBM footprint).
    """
    orig_shape = x.shape
    orig_dtype = x.dtype
    assert orig_shape[-1] == 1, "Linear(1, 1) expects a trailing feature dim of 1"

    w_s = jnp.asarray(weight, jnp.float32).reshape(1)
    b_s = jnp.asarray(bias, jnp.float32).reshape(1)

    n = int(x.size)
    if n == 0:
        return x
    if n < min_pallas_elems:
        # Small inputs: a pallas_call cannot amortize its launch / per-grid-step
        # overhead; let XLA fuse the elementwise affine op.
        return (x.astype(jnp.float32) * w_s[0] + b_s[0]).astype(orig_dtype)

    # Lane-dense slab: flatten the (..., 1) input and view it as (rows, 128).
    # Pad only the ragged tail up to the next multiple of 128 (<= 127 elements);
    # the ragged *block* tail is handled by a cdiv grid + Pallas masking, not by
    # padding to a whole number of blocks.
    flat = x.reshape(-1)
    n128 = _round_up(n, _LANES)
    padded = n128 != n
    if padded:
        # TODO(synk): the only remaining extra HBM pass (pad here + slice below);
        # it triggers only when n % 128 != 0.
        flat = jnp.pad(flat, (0, n128 - n))
    rows = n128 // _LANES
    slab = flat.reshape(rows, _LANES)

    # Block choice: big enough (~1 MiB) to amortize the ~0.35 us per-step overhead,
    # but capped so there are always >= 2 grid steps for v7x megacore sharding.
    eff_block_rows = min(block_rows, _round_up(pl.cdiv(rows, 2), _SUBLANES))
    if eff_block_rows >= rows:
        eff_block_rows = rows  # tiny forced-Pallas inputs: one full-extent block
    grid = (pl.cdiv(rows, eff_block_rows),)

    out = pl.pallas_call(
        _affine_kernel,
        out_shape=jax.ShapeDtypeStruct((rows, _LANES), orig_dtype),
        grid_spec=pltpu.PrefetchScalarGridSpec(
            num_scalar_prefetch=2,
            grid=grid,
            in_specs=[
                pl.BlockSpec((eff_block_rows, _LANES), lambda i, w, b: (i, 0)),
            ],
            out_specs=pl.BlockSpec((eff_block_rows, _LANES), lambda i, w, b: (i, 0)),
        ),
        compiler_params=pltpu.CompilerParams(
            dimension_semantics=("parallel",),
        ),
        # Flat call args are (w_s, b_s, slab) -> slab is input index 2.
        input_output_aliases=({2: 0} if alias_input else {}),
    )(w_s, b_s, slab)

    flat_out = out.reshape(-1)
    if padded:
        flat_out = flat_out[:n]
    return flat_out.reshape(orig_shape)


if __name__ == "__main__":
    key = jax.random.PRNGKey(0)
    kx1, kx2, kx3, kx4, kw, kb = jax.random.split(key, 6)

    # Deterministic params (PyTorch Linear(1, 1) init range is U(-1, 1)).
    weight = jax.random.uniform(kw, (1, 1), jnp.float32, minval=-1.0, maxval=1.0)
    bias = jax.random.uniform(kb, (1,), jnp.float32, minval=-1.0, maxval=1.0)

    def ref(x):
        return x @ weight.T + bias

    # 1) Default path, 128-aligned batch at the Pallas threshold: no pad / no
    #    output slice, 2 parallel grid steps.
    x1 = jax.random.normal(kx1, (65536, 1), jnp.float32)
    y1 = jax.block_until_ready(linear11(x1, weight, bias))
    assert y1.shape == x1.shape
    assert jnp.allclose(y1, ref(x1), atol=1e-6), "aligned pallas path mismatch"

    # 2) Small, unaligned batch forced onto the Pallas path: exercises the cdiv
    #    grid, masked partial final block, and the tiny tail pad/slice.
    x2 = jax.random.normal(kx2, (3000, 1), jnp.float32)
    y2 = jax.block_until_ready(linear11(x2, weight, bias, min_pallas_elems=0))
    assert jnp.allclose(y2, ref(x2), atol=1e-6), "ragged pallas path mismatch"

    # 3) Small aligned batch with input/output slab aliasing.
    x3 = jax.random.normal(kx3, (4096, 1), jnp.float32)
    y3_ref = ref(x3)
    y3 = jax.block_until_ready(
        linear11(x3, weight, bias, min_pallas_elems=0, alias_input=True))
    assert jnp.allclose(y3, y3_ref, atol=1e-6), "aliased pallas path mismatch"

    # 4) Tiny batch (typical module use) takes the fused-XLA fast path.
    x4 = jax.random.normal(kx4, (8, 1), jnp.float32)
    y4 = jax.block_until_ready(linear11(x4, weight, bias))
    assert jnp.allclose(y4, ref(x4), atol=1e-6), "small path mismatch"

    print("KERNEL_OK")
</pallas_src>

<mosaic_0001>
module attributes {stable_mosaic.version = 11 : i64} {
  func.func @_affine_kernel(%arg0: i32, %arg1: memref<1xf32, #tpu.memory_space<smem>>, %arg2: memref<1xf32, #tpu.memory_space<smem>>, %arg3: memref<256x128xf32, #tpu.memory_space<vmem>>, %arg4: memref<256x128xf32, #tpu.memory_space<vmem>>) attributes {dimension_semantics = [#tpu.dimension_semantics<parallel>], iteration_bounds = array<i64: 2>, scalar_prefetch = 2 : i64, scratch_operands = 0 : i64, tpu.core_type = #tpu.core_type<tc>, window_params = [{transform_indices = @transform_0, window_bounds = array<i64: 256, 128>}, {transform_indices = @transform_1, window_bounds = array<i64: 256, 128>}]} {
    %c0 = arith.constant 0 : index
    %0 = memref.load %arg1[%c0] : memref<1xf32, #tpu.memory_space<smem>>
    %c0_0 = arith.constant 0 : index
    %1 = memref.load %arg2[%c0_0] : memref<1xf32, #tpu.memory_space<smem>>
    %c0_1 = arith.constant 0 : index
    %c0_2 = arith.constant 0 : index
    %2 = vector.load %arg3[%c0_1, %c0_2] : memref<256x128xf32, #tpu.memory_space<vmem>>, vector<256x128xf32>
    %3 = vector.broadcast %0 : f32 to vector<256x128xf32>
    %4 = arith.mulf %2, %3 : vector<256x128xf32>
    %5 = vector.broadcast %1 : f32 to vector<256x128xf32>
    %6 = arith.addf %4, %5 : vector<256x128xf32>
    %c0_3 = arith.constant 0 : index
    %c0_4 = arith.constant 0 : index
    %7 = vector.load %arg4[%c0_3, %c0_4] : memref<256x128xf32, #tpu.memory_space<vmem>>, vector<256x128xf32>
    tpu.vector_store %arg4[%c0_3, %c0_4], %6 {strides = array<i32>} : memref<256x128xf32, #tpu.memory_space<vmem>>, vector<256x128xf32>,
    return
  }
  func.func @transform_0(%arg0: i32, %arg1: memref<1xf32, #tpu.memory_space<smem>>, %arg2: memref<1xf32, #tpu.memory_space<smem>>) -> (i32, i32) {
    %c0_i32 = arith.constant 0 : i32
    %c0_i32_0 = arith.constant 0 : i32
    return %arg0, %c0_i32 : i32, i32
  }
  func.func @transform_1(%arg0: i32, %arg1: memref<1xf32, #tpu.memory_space<smem>>, %arg2: memref<1xf32, #tpu.memory_space<smem>>) -> (i32, i32) {
    %c0_i32 = arith.constant 0 : i32
    %c0_i32_0 = arith.constant 0 : i32
    return %arg0, %c0_i32 : i32, i32
  }
}

</mosaic_0001>

<llo_original>
// kernel: tpu_custom_call.1
$region0: #{tpu_custom_call.1}
  #allocation0 [shape = 'u32[]', space=smem, size = 0x4, offset = 0x4, fixed_abs, tag = 'smem constant byte address 0x4 - core index']
  #allocation1 [shape = 'u32[144,128]{1,0:T(1,128)}', space=vmem, size = 0x12000, scoped, tag = 'internal scratch']
  #allocation2 [shape = 's32[1]{0}', space=sflag, size = 0x4, scoped, tag = 'scoped memory for tpu_custom_call.1']
  #allocation3 [shape = 'f32[1]{0:T(128)S(6)}', space=smem, size = 0x200, scoped, tag = 'prefetched SMEM operand 0']
  #allocation4 [shape = 'f32[1]{0:T(128)S(6)}', space=smem, size = 0x200, scoped, tag = 'prefetched SMEM operand 1']
  %s0 = inlined_call_operand.<no memory space> [shape: f32[1], index: 0, kind: input, shape index: {}]
  %s1 = inlined_call_operand.<no memory space> [shape: f32[1], index: 1, kind: input, shape index: {}]
  %s2 = inlined_call_operand.hbm [shape: f32[512,128], index: 2, kind: input, shape index: {}]
  %s3 = inlined_call_operand.hbm [shape: f32[512,128], index: 3, kind: output, shape index: {}]
  %s4 = sld [smem:[#allocation0]]
  $region41: #{tpu_custom_call.1} parent=0
    _
  %s6 = ssub.s32 1, %s4
  %s7 = scalar_select 0, %s6, %s4
  %8 = sst [smem:[#allocation3]] %s0
  %9 = sst [smem:[#allocation4]] %s1
  $region1: #{tpu_custom_call.1} parent=0
    #allocation5 [shape = 'u8[262144]{0}', space=vmem, size = 0x40000, scoped, tag = 'input window, operand 2']
    #allocation6 [shape = 's32[2]{0}', space=sflag, size = 0x8, scoped, tag = 'scoped memory for tpu_custom_call.1']
    #allocation7 [shape = 's32[2]{0}', space=sflag, size = 0x8, scoped, tag = 'scoped memory for tpu_custom_call.1']
    #allocation8 [shape = 'u8[262144]{0}', space=vmem, size = 0x40000, scoped, tag = 'output window, operand 0']
    %10 = vsyncpa [#allocation6], 0
    %s11 = scalar_lea.sflag [#allocation6], 1
    %12 = vsyncpa %s11, 0
    %13 = vsyncpa [#allocation7], 0
    %s14 = scalar_lea.sflag [#allocation7], 1
    %15 = vsyncpa %s14, 0
    loop: start=0, step=1, limit=4
    $region2: #{tpu_custom_call.1} parent=1 // loop_pre_header
      _
    $region3: #{tpu_custom_call.1} parent=1 // loop_header
      %s17 = sphi 0, %s21
      %p18 = scmp.ge.s32.totalorder %s17, 4
      %s27 = sphi 0, %s29
      %s30 = sphi 0, %s27
      %s31 = sphi 0, %s30
      %s47 = sphi 0, %s31
      %s53 = sphi 0, %s55
      %s56 = sphi 0, %s53
      %s57 = sphi 0, %s56
      %s73 = sphi 0, %s57
    $region4: #{tpu_custom_call.1} parent=1 // loop_header_branch
      %20 = sbr.rel (%p18) target = $region8
    $region5: #{tpu_custom_call.1} parent=1 // loop_body
      %s22 = ssub.s32 %s17, 1
      %s23 = ssub.s32 %s17, 2
      %s24 = sadd.s32 %s17, 1
      %s25 = ssub.s32 %s17, %s24
      %p26 = scmp.eq.s32.totalorder %s25, 0
      %s28 = sadd.s32 %s27, 1
      %s29 = scalar_select %p26, %s27, %s28
      %p32 = pneg %p26
      %p33 = scmp.eq.s32.totalorder %s17, 1
      %p34 = por %p32, %p33
      %p35 = scmp.ne.s32.totalorder %s27, %s30
      %p36 = scmp.eq.s32.totalorder %s17, 0
      %p37 = por %p35, %p36
      %p38 = scmp.ne.s32.totalorder %s27, %s30
      %p39 = scmp.eq.s32.totalorder %s22, 1
      %p40 = por %p38, %p39
      %p41 = scmp.ne.s32.totalorder %s30, %s31
      %p42 = scmp.eq.s32.totalorder %s22, 0
      %p43 = por %p41, %p42
      %p44 = scmp.ne.s32.totalorder %s30, %s31
      %p45 = scmp.eq.s32.totalorder %s23, 1
      %p46 = por %p44, %p45
      %p48 = scmp.ne.s32.totalorder %s31, %s47
      %p49 = scmp.eq.s32.totalorder %s23, 0
      %p50 = por %p48, %p49
      %s51 = ssub.s32 %s17, %s24
      %p52 = scmp.eq.s32.totalorder %s51, 0
      %s54 = sadd.s32 %s53, 1
      %s55 = scalar_select %p52, %s53, %s54
      %p58 = pneg %p52
      %p59 = scmp.eq.s32.totalorder %s17, 1
      %p60 = por %p58, %p59
      %p61 = scmp.ne.s32.totalorder %s53, %s56
      %p62 = scmp.eq.s32.totalorder %s17, 0
      %p63 = por %p61, %p62
      %p64 = scmp.ne.s32.totalorder %s53, %s56
      %p65 = scmp.eq.s32.totalorder %s22, 1
      %p66 = por %p64, %p65
      %p67 = scmp.ne.s32.totalorder %s56, %s57
      %p68 = scmp.eq.s32.totalorder %s22, 0
      %p69 = por %p67, %p68
      %p70 = scmp.ne.s32.totalorder %s56, %s57
      %p71 = scmp.eq.s32.totalorder %s23, 1
      %p72 = por %p70, %p71
      %p74 = scmp.ne.s32.totalorder %s57, %s73
      %p75 = scmp.eq.s32.totalorder %s23, 0
      %p76 = por %p74, %p75
      %p77 = scmp.le.s32.totalorder 1, %s17
      %p78 = scmp.lt.s32.totalorder %s17, 3
      %p79 = pnand %p77, %p78
      %p80 = pneg %p79
      // Predicated region
      $region9: #{tpu_custom_call.1} parent=5 // pred_check
        _
      $region10: #{tpu_custom_call.1} parent=5 // pred_check_branch
        %82 = sbr.rel (%p79) target = $region12
      $region11: #{tpu_custom_call.1} parent=5 // pred_region
        %s83 = ssub.s32 %s17, 1
      $region12: #{tpu_custom_call.1} parent=5 // pred_fallthru
        _
      %p84 = scmp.lt.s32.totalorder %s17, 2
      // Predicated region
      $region13: #{tpu_custom_call.1} parent=5 // pred_check
        %p85 = pneg %p84
      $region14: #{tpu_custom_call.1} parent=5 // pred_check_branch
        %87 = sbr.rel (%p85) target = $region16
      $region15: #{tpu_custom_call.1} parent=5 // pred_region
        // Predicated region
        $region17: #{tpu_custom_call.1} parent=15 // pred_check
          %p88 = pneg %p37
        $region18: #{tpu_custom_call.1} parent=15 // pred_check_branch
          %90 = sbr.rel (%p88) target = $region20
        $region19: #{tpu_custom_call.1} parent=15 // pred_region
          %s91 = sand.u32 %s27, 1
          %s92 = scalar_lea.sflag [#allocation6], %s91
          %s93 = sand.u32 %s27, 1
          %s94 = smul.addr %s93, 256
          %s95 = scalar_lea.vmem [#allocation5], %s94
          %s96 = smul.u32 32, %s17
          %s98 = ssub.s32 4096, 4096
          %99 = vsyncadd %s92, %s98
          %s100 = smul.addr %s96, 128
          %s101 = scalar_lea.hbm %s2, %s100
          %s102 = sshll.u32 %s95, 4
          %s103 = int_to_ptr.vmem [resolvable:$true] %s102
          %108 = dma.hbm_to_vmem [thread:$0]  %s101, 4096, %s103, %s92, 128, 128, 8
        $region20: #{tpu_custom_call.1} parent=15 // pred_fallthru
          _
      $region16: #{tpu_custom_call.1} parent=5 // pred_fallthru
        _
      %p109 = scmp.le.s32.totalorder 1, %s17
      %p110 = scmp.lt.s32.totalorder %s17, 3
      %p111 = pnand %p109, %p110
      %p112 = pneg %p111
      // Predicated region
      $region21: #{tpu_custom_call.1} parent=5 // pred_check
        _
      $region22: #{tpu_custom_call.1} parent=5 // pred_check_branch
        %114 = sbr.rel (%p111) target = $region24
      $region23: #{tpu_custom_call.1} parent=5 // pred_region
        %s115 = ssub.s32 %s17, 1
        %s116 = sand.u32 %s30, 1
        %s117 = scalar_lea.sflag [#allocation6], %s116
        %s118 = sand.u32 %s30, 1
        %s119 = smul.addr %s118, 256
        %s120 = scalar_lea.vmem [#allocation5], %s119
        // Predicated region
        $region25: #{tpu_custom_call.1} parent=23 // pred_check
          %p121 = pneg %p43
        $region26: #{tpu_custom_call.1} parent=23 // pred_check_branch
          %123 = sbr.rel (%p121) target = $region28
        $region27: #{tpu_custom_call.1} parent=23 // pred_region
          %124 = dma.done %s117, 4096
        $region28: #{tpu_custom_call.1} parent=23 // pred_fallthru
          _
        %s125 = sand.u32 %s30, 1
        %s126 = scalar_lea.sflag [#allocation6], %s125
        %s127 = sand.u32 %s30, 1
        %s128 = smul.addr %s127, 256
        %s129 = scalar_lea.vmem [#allocation5], %s128
        %p130 = pneg %p43
        %p131 = pneg %p40
        %p132 = pneg %p69
        %p133 = pneg %p66
        %s134 = sand.u32 %s56, 1
        %s135 = scalar_lea.sflag [#allocation7], %s134
        %s136 = sand.u32 %s56, 1
        %s137 = smul.addr %s136, 256
        %s138 = scalar_lea.vmem [#allocation8], %s137
        %s139 = smul.u32 32, %s22
        %s140 = smul.u32 32, %s22
        %s141 = sld [smem:[#allocation3]]
        %s142 = sld [smem:[#allocation4]]
        %v143 = vld [vmem:[%s120] sm:$0xff]
        %v144 = vld [vmem:[%s120 + $0x8] sm:$0xff]
        %v145 = vld [vmem:[%s120 + $0x10] sm:$0xff]
        %v146 = vld [vmem:[%s120 + $0x18] sm:$0xff]
        %v147 = vld [vmem:[%s120 + $0x20] sm:$0xff]
        %v148 = vld [vmem:[%s120 + $0x28] sm:$0xff]
        %v149 = vld [vmem:[%s120 + $0x30] sm:$0xff]
        %v150 = vld [vmem:[%s120 + $0x38] sm:$0xff]
        %v151 = vld [vmem:[%s120 + $0x40] sm:$0xff]
        %v152 = vld [vmem:[%s120 + $0x48] sm:$0xff]
        %v153 = vld [vmem:[%s120 + $0x50] sm:$0xff]
        %v154 = vld [vmem:[%s120 + $0x58] sm:$0xff]
        %v155 = vld [vmem:[%s120 + $0x60] sm:$0xff]
        %v156 = vld [vmem:[%s120 + $0x68] sm:$0xff]
        %v157 = vld [vmem:[%s120 + $0x70] sm:$0xff]
        %v158 = vld [vmem:[%s120 + $0x78] sm:$0xff]
        %v159 = vld [vmem:[%s120 + $0x80] sm:$0xff]
        %v160 = vld [vmem:[%s120 + $0x88] sm:$0xff]
        %v161 = vld [vmem:[%s120 + $0x90] sm:$0xff]
        %v162 = vld [vmem:[%s120 + $0x98] sm:$0xff]
        %v163 = vld [vmem:[%s120 + $0xa0] sm:$0xff]
        %v164 = vld [vmem:[%s120 + $0xa8] sm:$0xff]
        %v165 = vld [vmem:[%s120 + $0xb0] sm:$0xff]
        %v166 = vld [vmem:[%s120 + $0xb8] sm:$0xff]
        %v167 = vld [vmem:[%s120 + $0xc0] sm:$0xff]
        %v168 = vld [vmem:[%s120 + $0xc8] sm:$0xff]
        %v169 = vld [vmem:[%s120 + $0xd0] sm:$0xff]
        %v170 = vld [vmem:[%s120 + $0xd8] sm:$0xff]
        %v171 = vld [vmem:[%s120 + $0xe0] sm:$0xff]
        %v172 = vld [vmem:[%s120 + $0xe8] sm:$0xff]
        %v173 = vld [vmem:[%s120 + $0xf0] sm:$0xff]
        %v174 = vld [vmem:[%s120 + $0xf8] sm:$0xff]
        %v175 = vstv %s141
        %v176 = vmul.f32 %v143, %v175
        %v177 = vmul.f32 %v144, %v175
        %v178 = vmul.f32 %v145, %v175
        %v179 = vmul.f32 %v146, %v175
        %v180 = vmul.f32 %v147, %v175
        %v181 = vmul.f32 %v148, %v175
        %v182 = vmul.f32 %v149, %v175
        %v183 = vmul.f32 %v150, %v175
        %v184 = vmul.f32 %v151, %v175
        %v185 = vmul.f32 %v152, %v175
        %v186 = vmul.f32 %v153, %v175
        %v187 = vmul.f32 %v154, %v175
        %v188 = vmul.f32 %v155, %v175
        %v189 = vmul.f32 %v156, %v175
        %v190 = vmul.f32 %v157, %v175
        %v191 = vmul.f32 %v158, %v175
        %v192 = vmul.f32 %v159, %v175
        %v193 = vmul.f32 %v160, %v175
        %v194 = vmul.f32 %v161, %v175
        %v195 = vmul.f32 %v162, %v175
        %v196 = vmul.f32 %v163, %v175
        %v197 = vmul.f32 %v164, %v175
        %v198 = vmul.f32 %v165, %v175
        %v199 = vmul.f32 %v166, %v175
        %v200 = vmul.f32 %v167, %v175
        %v201 = vmul.f32 %v168, %v175
        %v202 = vmul.f32 %v169, %v175
        %v203 = vmul.f32 %v170, %v175
        %v204 = vmul.f32 %v171, %v175
        %v205 = vmul.f32 %v172, %v175
        %v206 = vmul.f32 %v173, %v175
        %v207 = vmul.f32 %v174, %v175
        %v208 = vstv %s142
        %v209 = vadd.f32 %v176, %v208
        %v210 = vadd.f32 %v177, %v208
        %v211 = vadd.f32 %v178, %v208
        %v212 = vadd.f32 %v179, %v208
        %v213 = vadd.f32 %v180, %v208
        %v214 = vadd.f32 %v181, %v208
        %v215 = vadd.f32 %v182, %v208
        %v216 = vadd.f32 %v183, %v208
        %v217 = vadd.f32 %v184, %v208
        %v218 = vadd.f32 %v185, %v208
        %v219 = vadd.f32 %v186, %v208
        %v220 = vadd.f32 %v187, %v208
        %v221 = vadd.f32 %v188, %v208
        %v222 = vadd.f32 %v189, %v208
        %v223 = vadd.f32 %v190, %v208
        %v224 = vadd.f32 %v191, %v208
        %v225 = vadd.f32 %v192, %v208
        %v226 = vadd.f32 %v193, %v208
        %v227 = vadd.f32 %v194, %v208
        %v228 = vadd.f32 %v195, %v208
        %v229 = vadd.f32 %v196, %v208
        %v230 = vadd.f32 %v197, %v208
        %v231 = vadd.f32 %v198, %v208
        %v232 = vadd.f32 %v199, %v208
        %v233 = vadd.f32 %v200, %v208
        %v234 = vadd.f32 %v201, %v208
        %v235 = vadd.f32 %v202, %v208
        %v236 = vadd.f32 %v203, %v208
        %v237 = vadd.f32 %v204, %v208
        %v238 = vadd.f32 %v205, %v208
        %v239 = vadd.f32 %v206, %v208
        %v240 = vadd.f32 %v207, %v208
        %241 = vst [vmem:[%s138] sm:$0xff] %v209
        %242 = vst [vmem:[%s138 + $0x8] sm:$0xff] %v210
        %243 = vst [vmem:[%s138 + $0x10] sm:$0xff] %v211
        %244 = vst [vmem:[%s138 + $0x18] sm:$0xff] %v212
        %245 = vst [vmem:[%s138 + $0x20] sm:$0xff] %v213
        %246 = vst [vmem:[%s138 + $0x28] sm:$0xff] %v214
        %247 = vst [vmem:[%s138 + $0x30] sm:$0xff] %v215
        %248 = vst [vmem:[%s138 + $0x38] sm:$0xff] %v216
        %249 = vst [vmem:[%s138 + $0x40] sm:$0xff] %v217
        %250 = vst [vmem:[%s138 + $0x48] sm:$0xff] %v218
        %251 = vst [vmem:[%s138 + $0x50] sm:$0xff] %v219
        %252 = vst [vmem:[%s138 + $0x58] sm:$0xff] %v220
        %253 = vst [vmem:[%s138 + $0x60] sm:$0xff] %v221
        %254 = vst [vmem:[%s138 + $0x68] sm:$0xff] %v222
        %255 = vst [vmem:[%s138 + $0x70] sm:$0xff] %v223
        %256 = vst [vmem:[%s138 + $0x78] sm:$0xff] %v224
        %257 = vst [vmem:[%s138 + $0x80] sm:$0xff] %v225
        %258 = vst [vmem:[%s138 + $0x88] sm:$0xff] %v226
        %259 = vst [vmem:[%s138 + $0x90] sm:$0xff] %v227
        %260 = vst [vmem:[%s138 + $0x98] sm:$0xff] %v228
        %261 = vst [vmem:[%s138 + $0xa0] sm:$0xff] %v229
        %262 = vst [vmem:[%s138 + $0xa8] sm:$0xff] %v230
        %263 = vst [vmem:[%s138 + $0xb0] sm:$0xff] %v231
        %264 = vst [vmem:[%s138 + $0xb8] sm:$0xff] %v232
        %265 = vst [vmem:[%s138 + $0xc0] sm:$0xff] %v233
        %266 = vst [vmem:[%s138 + $0xc8] sm:$0xff] %v234
        %267 = vst [vmem:[%s138 + $0xd0] sm:$0xff] %v235
        %268 = vst [vmem:[%s138 + $0xd8] sm:$0xff] %v236
        %269 = vst [vmem:[%s138 + $0xe0] sm:$0xff] %v237
        %270 = vst [vmem:[%s138 + $0xe8] sm:$0xff] %v238
        %271 = vst [vmem:[%s138 + $0xf0] sm:$0xff] %v239
        %272 = vst [vmem:[%s138 + $0xf8] sm:$0xff] %v240
        %s273 = sand.u32 %s56, 1
        %s274 = scalar_lea.sflag [#allocation7], %s273
        %s275 = sand.u32 %s56, 1
        %s276 = smul.addr %s275, 256
        %s277 = scalar_lea.vmem [#allocation8], %s276
        // Predicated region
        $region29: #{tpu_custom_call.1} parent=23 // pred_check
          %p278 = pneg %p66
        $region30: #{tpu_custom_call.1} parent=23 // pred_check_branch
          %280 = sbr.rel (%p278) target = $region32
        $region31: #{tpu_custom_call.1} parent=23 // pred_region
          %s281 = smul.u32 32, %s22
          %s283 = ssub.s32 4096, 4096
          %284 = vsyncadd %s274, %s283
          %s285 = smul.addr %s281, 128
          %s286 = scalar_lea.hbm %s3, %s285
          %s287 = sshll.u32 %s277, 4
          %s288 = int_to_ptr.vmem [resolvable:$true] %s287
          %293 = dma.vmem_to_hbm [thread:$0]  %s288, 4096, %s286, %s274, 128, 128, 8
        $region32: #{tpu_custom_call.1} parent=23 // pred_fallthru
          _
      $region24: #{tpu_custom_call.1} parent=5 // pred_fallthru
        _
      %p294 = scmp.le.s32.totalorder 2, %s17
      // Predicated region
      $region33: #{tpu_custom_call.1} parent=5 // pred_check
        %p295 = pneg %p294
      $region34: #{tpu_custom_call.1} parent=5 // pred_check_branch
        %297 = sbr.rel (%p295) target = $region36
      $region35: #{tpu_custom_call.1} parent=5 // pred_region
        %s298 = ssub.s32 %s17, 2
        // Predicated region
        $region37: #{tpu_custom_call.1} parent=35 // pred_check
          %p299 = pneg %p72
        $region38: #{tpu_custom_call.1} parent=35 // pred_check_branch
          %301 = sbr.rel (%p299) target = $region40
        $region39: #{tpu_custom_call.1} parent=35 // pred_region
          %s302 = sand.u32 %s57, 1
          %s303 = scalar_lea.sflag [#allocation7], %s302
          %s304 = sand.u32 %s57, 1
          %s305 = smul.addr %s304, 256
          %s306 = scalar_lea.vmem [#allocation8], %s305
          %307 = dma.done %s303, 4096
        $region40: #{tpu_custom_call.1} parent=35 // pred_fallthru
          _
      $region36: #{tpu_custom_call.1} parent=5 // pred_fallthru
        _
    $region6: #{tpu_custom_call.1} parent=1 // loop_footer
      %s21 = sadd.s32 1, %s17
    $region7: #{tpu_custom_call.1} parent=1 // loop_footer_branch
      %16 = sbr.rel target = $region3
    $region8: #{tpu_custom_call.1} parent=1 // loop_exit
      _
    %308 = vsyncpa [#allocation6], 1
    %s309 = scalar_lea.sflag [#allocation6], 1
    %310 = vsyncpa %s309, 1
    %311 = vsyncpa [#allocation7], 1
    %s312 = scalar_lea.sflag [#allocation7], 1
    %313 = vsyncpa %s312, 1

</llo_original>
